<compile_context>
chip_gen: v6e
topology: v6e:2x2x1
jax: 0.10.0
libtpu: 0.0.40
codegen_flags: <defaults>
</compile_context>

<pallas_src>
import functools

import jax
import jax.numpy as jnp
from jax.experimental import pallas as pl
from jax.experimental.pallas import tpu as pltpu


# --------------------------------------------------------------------------
# Static ResNet-101 architecture config (kept out of the traced param pytree)
# --------------------------------------------------------------------------
def _make_layer_cfg(inplanes, planes, blocks, stride):
    cfgs = [dict(inplanes=inplanes, planes=planes, stride=stride,
                 downsample=(stride != 1 or inplanes != planes * 4))]
    for _ in range(blocks - 1):
        cfgs.append(dict(inplanes=planes * 4, planes=planes, stride=1, downsample=False))
    return cfgs


LAYER_CFGS = [
    _make_layer_cfg(64, 64, 3, 1),
    _make_layer_cfg(256, 128, 4, 2),
    _make_layer_cfg(512, 256, 23, 2),
    _make_layer_cfg(1024, 512, 3, 2),
]


# --------------------------------------------------------------------------
# Pallas matmul kernel: bf16 operands, f32 accumulator, fused BN / residual / ReLU
# --------------------------------------------------------------------------
def _pick_tile(dim, cap, unit):
    """Largest multiple of `unit` <= cap that divides dim; else the full dim."""
    if dim <= cap:
        return dim
    t = (cap // unit) * unit
    while t >= unit:
        if dim % t == 0:
            return t
        t -= unit
    return dim


def _mm_epilogue(acc, s_ref, t_ref, r_ref, o_ref, relu):
    r = acc * s_ref[...] + t_ref[...]
    if r_ref is not None:
        r = r + r_ref[...].astype(jnp.float32)
    if relu:
        r = jnp.maximum(r, 0.0)
    o_ref[...] = r.astype(o_ref.dtype)


def _mm_kernel(a_ref, b_ref, s_ref, t_ref, o_ref, acc_ref, *, relu):
    k = pl.program_id(2)

    @pl.when(k == 0)
    def _():
        acc_ref[...] = jnp.zeros_like(acc_ref)

    acc_ref[...] += jnp.dot(a_ref[...], b_ref[...], preferred_element_type=jnp.float32)

    @pl.when(k == pl.num_programs(2) - 1)
    def _():
        _mm_epilogue(acc_ref[...], s_ref, t_ref, None, o_ref, relu)


def _mm_res_kernel(a_ref, b_ref, s_ref, t_ref, r_ref, o_ref, acc_ref, *, relu):
    k = pl.program_id(2)

    @pl.when(k == 0)
    def _():
        acc_ref[...] = jnp.zeros_like(acc_ref)

    acc_ref[...] += jnp.dot(a_ref[...], b_ref[...], preferred_element_type=jnp.float32)

    @pl.when(k == pl.num_programs(2) - 1)
    def _():
        _mm_epilogue(acc_ref[...], s_ref, t_ref, r_ref, o_ref, relu)


def matmul_bn_act(a, b, scale, shift, residual=None, *, relu=False,
                  out_dtype=jnp.bfloat16):
    """out = act((a @ b) * scale + shift [+ residual]) with bf16 MXU + f32 accumulation."""
    M, K = a.shape
    K2, N = b.shape
    assert K == K2
    tm = _pick_tile(M, 256, 8)
    tk = _pick_tile(K, 512, 128)
    tn = _pick_tile(N, 256, 128)     # tn<=256 keeps >=2 parallel blocks for big Cout (v7x)

    a = a.astype(jnp.bfloat16)
    b = b.astype(jnp.bfloat16)
    s2 = scale.reshape(1, N).astype(jnp.float32)
    t2 = shift.reshape(1, N).astype(jnp.float32)

    in_specs = [
        pl.BlockSpec((tm, tk), lambda i, j, k: (i, k)),
        pl.BlockSpec((tk, tn), lambda i, j, k: (k, j)),
        pl.BlockSpec((1, tn), lambda i, j, k: (0, j)),
        pl.BlockSpec((1, tn), lambda i, j, k: (0, j)),
    ]
    args = [a, b, s2, t2]
    if residual is not None:
        in_specs.append(pl.BlockSpec((tm, tn), lambda i, j, k: (i, j)))
        args.append(residual.astype(jnp.bfloat16))
        kern = functools.partial(_mm_res_kernel, relu=relu)
    else:
        kern = functools.partial(_mm_kernel, relu=relu)

    return pl.pallas_call(
        kern,
        out_shape=jax.ShapeDtypeStruct((M, N), out_dtype),
        grid_spec=pltpu.PrefetchScalarGridSpec(
            num_scalar_prefetch=0,
            grid=(M // tm, N // tn, K // tk),
            in_specs=in_specs,
            out_specs=pl.BlockSpec((tm, tn), lambda i, j, k: (i, j)),
            scratch_shapes=[pltpu.VMEM((tm, tn), jnp.float32)],
        ),
        compiler_params=pltpu.CompilerParams(
            dimension_semantics=("parallel", "parallel", "arbitrary"),
            vmem_limit_bytes=32 * 1024 * 1024,
        ),
    )(*args)


@functools.partial(jax.jit, static_argnames=("relu", "out_dtype"))
def dense(x, w, b, *, relu=False, out_dtype=jnp.bfloat16):
    n = w.shape[1]
    return matmul_bn_act(x, w, jnp.ones((n,), jnp.float32), b, relu=relu,
                         out_dtype=out_dtype)


# --------------------------------------------------------------------------
# Conv2d (NHWC im2col glue) + fused BN / residual / ReLU Pallas matmul
# --------------------------------------------------------------------------
@functools.partial(jax.jit, static_argnames=("kh", "kw", "stride", "padding", "relu"))
def conv2d_bn_act(x, wmat, scale, shift, residual=None, *, kh, kw, stride, padding, relu):
    """x: (N,H,W,C) bf16, wmat: (kh*kw*C, Cout) bf16 (pre-reshaped at init)."""
    N, H, W, C = x.shape
    Cout = wmat.shape[1]
    Ho = (H + 2 * padding - kh) // stride + 1
    Wo = (W + 2 * padding - kw) // stride + 1
    if kh == 1 and kw == 1 and padding == 0:
        xs = x if stride == 1 else x[:, ::stride, ::stride, :]
        col = xs.reshape(N * Ho * Wo, C)
    else:
        xp = jnp.pad(x, ((0, 0), (padding, padding), (padding, padding), (0, 0)))
        pats = []
        for i in range(kh):
            for j in range(kw):
                pats.append(jax.lax.slice(
                    xp, (0, i, j, 0),
                    (N, i + stride * (Ho - 1) + 1, j + stride * (Wo - 1) + 1, C),
                    (1, stride, stride, 1)))
        # (N, Ho, Wo, kh*kw, C) -> rows (n,ho,wo), cols ordered (i, j, c) to match wmat
        col = jnp.stack(pats, axis=3).reshape(N * Ho * Wo, kh * kw * C)
    res2 = None if residual is None else residual.reshape(N * Ho * Wo, Cout)
    out = matmul_bn_act(col, wmat, scale, shift, res2, relu=relu)
    return out.reshape(N, Ho, Wo, Cout)


def bottleneck(x, p, cfg):
    """torchvision Bottleneck (expansion=4, stride on conv2); add+ReLU fused into conv3."""
    stride = cfg['stride']
    if cfg['downsample']:
        identity = conv2d_bn_act(x, p['ds_w'], p['ds_scale'], p['ds_shift'],
                                 kh=1, kw=1, stride=stride, padding=0, relu=False)
    else:
        identity = x
    out = conv2d_bn_act(x, p['w1'], p['s1'], p['b1'],
                        kh=1, kw=1, stride=1, padding=0, relu=True)
    out = conv2d_bn_act(out, p['w2'], p['s2'], p['b2'],
                        kh=3, kw=3, stride=stride, padding=1, relu=True)
    out = conv2d_bn_act(out, p['w3'], p['s3'], p['b3'], residual=identity,
                        kh=1, kw=1, stride=1, padding=0, relu=True)
    return out


# --------------------------------------------------------------------------
# Pooling kernels (lane-dense: channels on the lane axis)
# --------------------------------------------------------------------------
def _maxpool_kernel(x_ref, o_ref):
    o_ref[...] = jnp.max(x_ref[...], axis=0)


@jax.jit
def maxpool_3x3_s2_p1(x):
    """nn.MaxPool2d(3, stride=2, padding=1) on NHWC input."""
    N, H, W, C = x.shape
    Ho = (H + 2 - 3) // 2 + 1
    Wo = (W + 2 - 3) // 2 + 1
    xp = jnp.pad(x, ((0, 0), (1, 1), (1, 1), (0, 0)), constant_values=-jnp.inf)
    pats = []
    for i in range(3):
        for j in range(3):
            pats.append(jax.lax.slice(
                xp, (0, i, j, 0),
                (N, i + 2 * (Ho - 1) + 1, j + 2 * (Wo - 1) + 1, C),
                (1, 2, 2, 1)))
    M = N * Ho * Wo
    col = jnp.stack(pats, axis=0).reshape(9, M, C)
    tm = _pick_tile(M, 256, 8)
    out = pl.pallas_call(
        _maxpool_kernel,
        out_shape=jax.ShapeDtypeStruct((M, C), x.dtype),
        grid_spec=pltpu.PrefetchScalarGridSpec(
            num_scalar_prefetch=0,
            grid=(M // tm,),
            in_specs=[pl.BlockSpec((9, tm, C), lambda i: (0, i, 0))],
            out_specs=pl.BlockSpec((tm, C), lambda i: (i, 0)),
        ),
        compiler_params=pltpu.CompilerParams(dimension_semantics=("parallel",)),
    )(col)
    return out.reshape(N, Ho, Wo, C)


def _gmp_kernel(x_ref, o_ref):
    o_ref[...] = jnp.max(x_ref[...], axis=1)


@jax.jit
def global_max_pool(x):
    """nn.AdaptiveMaxPool2d((1,1)) on NHWC -> (N, C) with C lane-dense."""
    N, H, W, C = x.shape
    x3 = x.reshape(N, H * W, C)
    return pl.pallas_call(
        _gmp_kernel,
        out_shape=jax.ShapeDtypeStruct((N, C), x.dtype),
        grid=(1,),
        in_specs=[pl.BlockSpec((N, H * W, C), lambda i: (0, 0, 0))],
        out_specs=pl.BlockSpec((N, C), lambda i: (0, 0)),
    )(x3)


# --------------------------------------------------------------------------
# Fused GCN head: gc1 -> relu -> gc2 -> transpose -> x @ gcn_feature.T  (one kernel)
# --------------------------------------------------------------------------
def _gcn_head_kernel(x_ref, inp_ref, adj_ref, w1_ref, w2_ref, o_ref):
    f32 = jnp.float32
    support = jnp.dot(inp_ref[...], w1_ref[...], preferred_element_type=f32)     # (C, 1024)
    h = jnp.maximum(jnp.dot(adj_ref[...], support, preferred_element_type=f32), 0.0)
    support2 = jnp.dot(h, w2_ref[...], preferred_element_type=f32)               # (C, C)
    g = jnp.dot(adj_ref[...], support2, preferred_element_type=f32)              # (C, C)
    # x @ g.T  (contract last dims of both -> no explicit transpose)
    o_ref[...] = jax.lax.dot_general(
        x_ref[...], g, (((1,), (1,)), ((), ())), preferred_element_type=f32)


@jax.jit
def gcn_head(x, inp, adj, w1, w2):
    bs, C = x.shape
    in_ch = inp.shape[1]
    hid = w1.shape[1]
    return pl.pallas_call(
        _gcn_head_kernel,
        out_shape=jax.ShapeDtypeStruct((bs, C), jnp.float32),
        grid=(1,),
        in_specs=[pl.BlockSpec((bs, C), lambda i: (0, 0)),
                  pl.BlockSpec((C, in_ch), lambda i: (0, 0)),
                  pl.BlockSpec((C, C), lambda i: (0, 0)),
                  pl.BlockSpec((in_ch, hid), lambda i: (0, 0)),
                  pl.BlockSpec((hid, C), lambda i: (0, 0))],
        out_specs=pl.BlockSpec((bs, C), lambda i: (0, 0)),
    )(x, inp, adj, w1, w2)


# --------------------------------------------------------------------------
# Parameter construction (deterministic, synthetic); weights pre-reshaped / pre-folded
# --------------------------------------------------------------------------
def init_params(key, num_classes, in_channel):
    cnt = [0]

    def nk():
        cnt[0] += 1
        return jax.random.fold_in(key, cnt[0])

    def conv_wmat(cout, cin, k):
        fan_in = cin * k * k
        w = jax.random.normal(nk(), (cout, cin, k, k), jnp.float32) * (1.0 / fan_in) ** 0.5
        # (Cout, Cin, kh, kw) -> (kh, kw, Cin, Cout) -> (kh*kw*Cin, Cout); matches col (i,j,c)
        return w.transpose(2, 3, 1, 0).reshape(k * k * cin, cout).astype(jnp.bfloat16)

    def bn_fold(c):
        # eval-mode BatchNorm, freshly-initialized stats (gamma=1, beta=0, mean=0, var=1)
        # TODO(synk): train-mode BN (batch statistics) not implemented.
        eps = 1e-5
        return (jnp.full((c,), 1.0 / (1.0 + eps) ** 0.5, jnp.float32),
                jnp.zeros((c,), jnp.float32))

    def linear(i, o):
        bound = 1.0 / (i ** 0.5)
        w = jax.random.uniform(nk(), (i, o), jnp.float32, -bound, bound).astype(jnp.bfloat16)
        b = jax.random.uniform(nk(), (o,), jnp.float32, -bound, bound)
        return w, b

    def gcn_w(i, o):
        stdv = 1.0 / (o ** 0.5)
        return jax.random.uniform(nk(), (i, o), jnp.float32, -stdv, stdv)

    def bottleneck_params(cfg):
        inplanes, planes = cfg['inplanes'], cfg['planes']
        s1, b1 = bn_fold(planes)
        s2, b2 = bn_fold(planes)
        s3, b3 = bn_fold(planes * 4)
        p = dict(w1=conv_wmat(planes, inplanes, 1), s1=s1, b1=b1,
                 w2=conv_wmat(planes, planes, 3), s2=s2, b2=b2,
                 w3=conv_wmat(planes * 4, planes, 1), s3=s3, b3=b3)
        if cfg['downsample']:
            p['ds_w'] = conv_wmat(planes * 4, inplanes, 1)
            p['ds_scale'], p['ds_shift'] = bn_fold(planes * 4)
        return p

    params = {}
    # stem: module's own Conv2d(1, 64, 7, stride=2, padding=3, bias=False) + bn1
    params['conv1_w'] = conv_wmat(64, 1, 7)
    params['conv1_s'], params['conv1_b'] = bn_fold(64)
    params['layers'] = [[bottleneck_params(c) for c in layer] for layer in LAYER_CFGS]
    # last_linear: 2048->1024 ReLU Dropout 1024->1024 ReLU Dropout 1024->num_classes
    params['fc1_w'], params['fc1_b'] = linear(2048, 1024)
    params['fc2_w'], params['fc2_b'] = linear(1024, 1024)
    params['fc3_w'], params['fc3_b'] = linear(1024, num_classes)
    # GraphConvolution weights
    params['gc1_w'] = gcn_w(in_channel, 1024)
    params['gc2_w'] = gcn_w(1024, num_classes)
    # TODO(synk): gen_A() reads adj_file; synthesize a normalized adjacency + identity instead.
    a = jax.random.uniform(nk(), (num_classes, num_classes), jnp.float32)
    a = 0.25 * a / (a.sum(0, keepdims=True) + 1e-6) + jnp.eye(num_classes, dtype=jnp.float32)
    params['A'] = a
    return params


def gen_adj(A):
    # torch: D = diag(rowsum(A)^-0.5); adj = (A @ D).T @ D   (tiny parameter preprocessing)
    D = jnp.power(A.sum(axis=1), -0.5)
    return (D[:, None] * A.T) * D[None, :]


# --------------------------------------------------------------------------
# Full GCNResNet forward
# --------------------------------------------------------------------------
def gcn_resnet_forward(params, image, inp):
    # NCHW -> NHWC, bf16 activations end-to-end
    x = jnp.transpose(image, (0, 2, 3, 1)).astype(jnp.bfloat16)
    x = conv2d_bn_act(x, params['conv1_w'], params['conv1_s'], params['conv1_b'],
                      kh=7, kw=7, stride=2, padding=3, relu=True)
    x = maxpool_3x3_s2_p1(x)
    for layer_cfg, layer_p in zip(LAYER_CFGS, params['layers']):
        for cfg, p in zip(layer_cfg, layer_p):
            x = bottleneck(x, p, cfg)
    # global max pool + MLP head
    x = global_max_pool(x)                                          # (bs, 2048)
    # TODO(synk): Dropout layers implemented as identity (eval mode).
    x = dense(x, params['fc1_w'], params['fc1_b'], relu=True)
    x = dense(x, params['fc2_w'], params['fc2_b'], relu=True)
    x = dense(x, params['fc3_w'], params['fc3_b'], relu=False, out_dtype=jnp.float32)
    # fused GCN branch + final matmul
    adj = gen_adj(params['A'])
    out = gcn_head(x, inp, adj, params['gc1_w'], params['gc2_w'])   # (bs, num_classes)
    return out


if __name__ == "__main__":
    NUM_CLASSES = 8     # module default 80; small synthetic config
    IN_CHANNEL = 16     # module default 300; small synthetic config
    key = jax.random.PRNGKey(0)
    params = init_params(jax.random.fold_in(key, 1), NUM_CLASSES, IN_CHANNEL)
    # input: NCHW with 1 channel (conv1 = Conv2d(1, 64, ...)); inp: (num_classes, in_channel)
    image = jax.random.normal(jax.random.fold_in(key, 2), (2, 1, 64, 64), jnp.float32)
    inp = jax.random.normal(jax.random.fold_in(key, 3), (NUM_CLASSES, IN_CHANNEL), jnp.float32)

    out = gcn_resnet_forward(params, image, inp)
    out = jax.block_until_ready(out)
    assert out.shape == (2, NUM_CLASSES)
    assert bool(jnp.all(jnp.isfinite(out)))
    print("KERNEL_OK")
</pallas_src>

<mosaic_0001>
module attributes {stable_mosaic.version = 11 : i64} {
  func.func @_mm_kernel(%arg0: i32, %arg1: i32, %arg2: i32, %arg3: memref<256x49xbf16, #tpu.memory_space<vmem>>, %arg4: memref<49x64xbf16, #tpu.memory_space<vmem>>, %arg5: memref<1x64xf32, #tpu.memory_space<vmem>>, %arg6: memref<1x64xf32, #tpu.memory_space<vmem>>, %arg7: memref<256x64xbf16, #tpu.memory_space<vmem>>, %arg8: memref<256x64xf32, #tpu.memory_space<vmem>>) attributes {dimension_semantics = [#tpu.dimension_semantics<parallel>, #tpu.dimension_semantics<parallel>, #tpu.dimension_semantics<arbitrary>], iteration_bounds = array<i64: 8, 1, 1>, scalar_prefetch = 0 : i64, scratch_operands = 1 : i64, tpu.core_type = #tpu.core_type<tc>, window_params = [{transform_indices = @transform_0, window_bounds = array<i64: 256, 49>}, {transform_indices = @transform_1, window_bounds = array<i64: 49, 64>}, {transform_indices = @transform_2, window_bounds = array<i64: 1, 64>}, {transform_indices = @transform_3, window_bounds = array<i64: 1, 64>}, {transform_indices = @transform_4, window_bounds = array<i64: 256, 64>}]} {
    %c0_i32 = arith.constant 0 : i32
    %0 = arith.cmpi eq, %arg2, %c0_i32 : i32
    %1 = arith.extui %0 : i1 to i32
    %c0_i32_0 = arith.constant 0 : i32
    %2 = arith.cmpi ne, %1, %c0_i32_0 : i32
    scf.if %2 {
      %cst_10 = arith.constant 0.000000e+00 : f32
      %12 = vector.broadcast %cst_10 : f32 to vector<256x64xf32>
      %c0_11 = arith.constant 0 : index
      %c0_12 = arith.constant 0 : index
      %13 = vector.load %arg8[%c0_11, %c0_12] : memref<256x64xf32, #tpu.memory_space<vmem>>, vector<256x64xf32>
      tpu.vector_store %arg8[%c0_11, %c0_12], %12 {strides = array<i32>} : memref<256x64xf32, #tpu.memory_space<vmem>>, vector<256x64xf32>,
    } else {
    }
    %c0 = arith.constant 0 : index
    %c0_1 = arith.constant 0 : index
    %3 = vector.load %arg8[%c0, %c0_1] : memref<256x64xf32, #tpu.memory_space<vmem>>, vector<256x64xf32>
    %c0_2 = arith.constant 0 : index
    %c0_3 = arith.constant 0 : index
    %4 = vector.load %arg3[%c0_2, %c0_3] : memref<256x49xbf16, #tpu.memory_space<vmem>>, vector<256x49xbf16>
    %c0_4 = arith.constant 0 : index
    %c0_5 = arith.constant 0 : index
    %5 = vector.load %arg4[%c0_4, %c0_5] : memref<49x64xbf16, #tpu.memory_space<vmem>>, vector<49x64xbf16>
    %cst = arith.constant dense<0.000000e+00> : vector<256x64xf32>
    %6 = tpu.matmul %4, %5, %cst {dimension_numbers = #tpu.dot_dimension_numbers<[1], [0], [0], [1], [0, 0, 1, 1], [], []>} : vector<256x49xbf16>, vector<49x64xbf16>, vector<256x64xf32> -> vector<256x64xf32>
    %7 = arith.addf %3, %6 : vector<256x64xf32>
    %c0_6 = arith.constant 0 : index
    %c0_7 = arith.constant 0 : index
    %8 = vector.load %arg8[%c0_6, %c0_7] : memref<256x64xf32, #tpu.memory_space<vmem>>, vector<256x64xf32>
    tpu.vector_store %arg8[%c0_6, %c0_7], %7 {strides = array<i32>} : memref<256x64xf32, #tpu.memory_space<vmem>>, vector<256x64xf32>,
    %c0_i32_8 = arith.constant 0 : i32
    %9 = arith.cmpi eq, %arg2, %c0_i32_8 : i32
    %10 = arith.extui %9 : i1 to i32
    %c0_i32_9 = arith.constant 0 : i32
    %11 = arith.cmpi ne, %10, %c0_i32_9 : i32
    scf.if %11 {
      %c0_10 = arith.constant 0 : index
      %c0_11 = arith.constant 0 : index
      %12 = vector.load %arg8[%c0_10, %c0_11] : memref<256x64xf32, #tpu.memory_space<vmem>>, vector<256x64xf32>
      %c0_12 = arith.constant 0 : index
      %c0_13 = arith.constant 0 : index
      %13 = vector.load %arg5[%c0_12, %c0_13] : memref<1x64xf32, #tpu.memory_space<vmem>>, vector<1x64xf32>
      %14 = vector.broadcast %13 : vector<1x64xf32> to vector<256x64xf32>
      %15 = arith.mulf %12, %14 : vector<256x64xf32>
      %c0_14 = arith.constant 0 : index
      %c0_15 = arith.constant 0 : index
      %16 = vector.load %arg6[%c0_14, %c0_15] : memref<1x64xf32, #tpu.memory_space<vmem>>, vector<1x64xf32>
      %17 = vector.broadcast %16 : vector<1x64xf32> to vector<256x64xf32>
      %18 = arith.addf %15, %17 : vector<256x64xf32>
      %cst_16 = arith.constant 0.000000e+00 : f32
      %19 = vector.broadcast %cst_16 : f32 to vector<256x64xf32>
      %20 = arith.maximumf %18, %19 : vector<256x64xf32>
      %21 = arith.truncf %20 : vector<256x64xf32> to vector<256x64xbf16>
      %c0_17 = arith.constant 0 : index
      %c0_18 = arith.constant 0 : index
      %22 = vector.load %arg7[%c0_17, %c0_18] : memref<256x64xbf16, #tpu.memory_space<vmem>>, vector<256x64xbf16>
      tpu.vector_store %arg7[%c0_17, %c0_18], %21 {strides = array<i32>} : memref<256x64xbf16, #tpu.memory_space<vmem>>, vector<256x64xbf16>,
    } else {
    }
    return
  }
  func.func @transform_0(%arg0: i32, %arg1: i32, %arg2: i32) -> (i32, i32) {
    %c0_i32 = arith.constant 0 : i32
    return %arg0, %arg2 : i32, i32
  }
  func.func @transform_1(%arg0: i32, %arg1: i32, %arg2: i32) -> (i32, i32) {
    %c0_i32 = arith.constant 0 : i32
    return %arg2, %arg1 : i32, i32
  }
  func.func @transform_2(%arg0: i32, %arg1: i32, %arg2: i32) -> (i32, i32) {
    %c0_i32 = arith.constant 0 : i32
    %c0_i32_0 = arith.constant 0 : i32
    return %c0_i32, %arg1 : i32, i32
  }
  func.func @transform_3(%arg0: i32, %arg1: i32, %arg2: i32) -> (i32, i32) {
    %c0_i32 = arith.constant 0 : i32
    %c0_i32_0 = arith.constant 0 : i32
    return %c0_i32, %arg1 : i32, i32
  }
  func.func @transform_4(%arg0: i32, %arg1: i32, %arg2: i32) -> (i32, i32) {
    %c0_i32 = arith.constant 0 : i32
    return %arg0, %arg1 : i32, i32
  }
}

</mosaic_0001>

<llo_original>
// kernel: conv2d_bn_act.1
$region0: #{conv2d_bn_act.1}
  #allocation0 [shape = 'u32[]', space=smem, size = 0x4, offset = 0x4, fixed_abs, tag = 'smem constant byte address 0x4 - core index']
  #allocation1 [shape = 'u32[144,128]{1,0:T(1,128)}', space=vmem, size = 0x12000, scoped, tag = 'internal scratch']
  #allocation2 [shape = 'f32[256,64]{1,0:T(8,128)}', space=vmem, size = 0x20000, scoped, tag = 'scratch operand']
  %s0 = inlined_call_operand.vmem [shape: bf16[2048,49], index: 0, kind: input, shape index: {}]
  %s1 = inlined_call_operand.vmem [shape: bf16[49,64], index: 1, kind: input, shape index: {}]
  %s2 = inlined_call_operand.vmem [shape: f32[1,64], index: 2, kind: input, shape index: {}]
  %s3 = inlined_call_operand.vmem [shape: f32[1,64], index: 3, kind: input, shape index: {}]
  %s4 = inlined_call_operand.hbm [shape: bf16[2048,64], index: 4, kind: output, shape index: {}]
  %s5 = sld [smem:[#allocation0]]
  $region57: #{conv2d_bn_act.1} parent=0
    _
  %s7 = ssub.s32 1, %s5
  %s8 = scalar_select 0, %s7, %s5
  $region1: #{conv2d_bn_act.1} parent=0
    #allocation3 [shape = 'u8[131072]{0}', space=vmem, size = 0x20000, scoped, tag = 'output window, operand 0']
    #allocation4 [shape = 's32[2]{0}', space=sflag, size = 0x8, scoped, tag = 'scoped memory for conv2d_bn_act.1']
    %9 = vsyncpa [#allocation4], 0
    %s10 = scalar_lea.sflag [#allocation4], 1
    %11 = vsyncpa %s10, 0
    loop: start=0, step=1, limit=10
    $region2: #{conv2d_bn_act.1} parent=1 // loop_pre_header
      _
    $region3: #{conv2d_bn_act.1} parent=1 // loop_header
      %s13 = sphi 0, %s17
      %p14 = scmp.ge.s32.totalorder %s13, 10
      %s20 = sphi 0, %s39
      %s21 = sphi 0, %s35
      %s22 = sphi 0, %s31
      %s23 = sphi 0, %s20
      %s24 = sphi 0, %s21
      %s25 = sphi 0, %s22
      %s26 = sphi 0, %s23
      %s27 = sphi 0, %s24
      %s28 = sphi 0, %s25
      %s44 = sphi 0, %s46
      %s47 = sphi 0, %s44
      %s48 = sphi 0, %s47
      %s64 = sphi 0, %s48
      %s72 = sphi 0, %s74
      %s75 = sphi 0, %s72
      %s76 = sphi 0, %s75
      %s92 = sphi 0, %s76
      %s98 = sphi 0, %s100
      %s101 = sphi 0, %s98
      %s102 = sphi 0, %s101
      %s118 = sphi 0, %s102
      %s124 = sphi 0, %s126
      %s127 = sphi 0, %s124
      %s128 = sphi 0, %s127
      %s144 = sphi 0, %s128
      %s152 = sphi 0, %s154
      %s155 = sphi 0, %s152
      %s156 = sphi 0, %s155
      %s172 = sphi 0, %s156
    $region4: #{conv2d_bn_act.1} parent=1 // loop_header_branch
      %16 = sbr.rel (%p14) target = $region8
    $region5: #{conv2d_bn_act.1} parent=1 // loop_body
      %s18 = ssub.s32 %s13, 1
      %s19 = ssub.s32 %s13, 2
      %s29 = sadd.s32 1, %s22
      %p30 = scmp.ge.s32.totalorder %s29, 1
      %s31 = scalar_select %p30, 0, %s29
      %s32 = sadd.s32 1, %s21
      %s33 = scalar_select %p30, %s32, %s21
      %p34 = scmp.ge.s32.totalorder %s33, 1
      %s35 = scalar_select %p34, 0, %s33
      %s36 = sadd.s32 1, %s20
      %s37 = scalar_select %p34, %s36, %s20
      %p38 = scmp.ge.s32.totalorder %s37, 8
      %s39 = scalar_select %p38, 0, %s37
      %s40 = ssub.s32 %s20, %s39
      %s41 = ssub.s32 %s22, %s31
      %s42 = sor.u32 %s40, %s41
      %p43 = scmp.eq.s32.totalorder %s42, 0
      %s45 = sadd.s32 %s44, 1
      %s46 = scalar_select %p43, %s44, %s45
      %p49 = pneg %p43
      %p50 = scmp.eq.s32.totalorder %s13, 7
      %p51 = por %p49, %p50
      %p52 = scmp.ne.s32.totalorder %s44, %s47
      %p53 = scmp.eq.s32.totalorder %s13, 0
      %p54 = por %p52, %p53
      %p55 = scmp.ne.s32.totalorder %s44, %s47
      %p56 = scmp.eq.s32.totalorder %s18, 7
      %p57 = por %p55, %p56
      %p58 = scmp.ne.s32.totalorder %s47, %s48
      %p59 = scmp.eq.s32.totalorder %s18, 0
      %p60 = por %p58, %p59
      %p61 = scmp.ne.s32.totalorder %s47, %s48
      %p62 = scmp.eq.s32.totalorder %s19, 7
      %p63 = por %p61, %p62
      %p65 = scmp.ne.s32.totalorder %s48, %s64
      %p66 = scmp.eq.s32.totalorder %s19, 0
      %p67 = por %p65, %p66
      %s68 = ssub.s32 %s22, %s31
      %s69 = ssub.s32 %s21, %s35
      %s70 = sor.u32 %s68, %s69
      %p71 = scmp.eq.s32.totalorder %s70, 0
      %s73 = sadd.s32 %s72, 1
      %s74 = scalar_select %p71, %s72, %s73
      %p77 = pneg %p71
      %p78 = scmp.eq.s32.totalorder %s13, 7
      %p79 = por %p77, %p78
      %p80 = scmp.ne.s32.totalorder %s72, %s75
      %p81 = scmp.eq.s32.totalorder %s13, 0
      %p82 = por %p80, %p81
      %p83 = scmp.ne.s32.totalorder %s72, %s75
      %p84 = scmp.eq.s32.totalorder %s18, 7
      %p85 = por %p83, %p84
      %p86 = scmp.ne.s32.totalorder %s75, %s76
      %p87 = scmp.eq.s32.totalorder %s18, 0
      %p88 = por %p86, %p87
      %p89 = scmp.ne.s32.totalorder %s75, %s76
      %p90 = scmp.eq.s32.totalorder %s19, 7
      %p91 = por %p89, %p90
      %p93 = scmp.ne.s32.totalorder %s76, %s92
      %p94 = scmp.eq.s32.totalorder %s19, 0
      %p95 = por %p93, %p94
      %s96 = ssub.s32 %s21, %s35
      %p97 = scmp.eq.s32.totalorder %s96, 0
      %s99 = sadd.s32 %s98, 1
      %s100 = scalar_select %p97, %s98, %s99
      %p103 = pneg %p97
      %p104 = scmp.eq.s32.totalorder %s13, 7
      %p105 = por %p103, %p104
      %p106 = scmp.ne.s32.totalorder %s98, %s101
      %p107 = scmp.eq.s32.totalorder %s13, 0
      %p108 = por %p106, %p107
      %p109 = scmp.ne.s32.totalorder %s98, %s101
      %p110 = scmp.eq.s32.totalorder %s18, 7
      %p111 = por %p109, %p110
      %p112 = scmp.ne.s32.totalorder %s101, %s102
      %p113 = scmp.eq.s32.totalorder %s18, 0
      %p114 = por %p112, %p113
      %p115 = scmp.ne.s32.totalorder %s101, %s102
      %p116 = scmp.eq.s32.totalorder %s19, 7
      %p117 = por %p115, %p116
      %p119 = scmp.ne.s32.totalorder %s102, %s118
      %p120 = scmp.eq.s32.totalorder %s19, 0
      %p121 = por %p119, %p120
      %s122 = ssub.s32 %s21, %s35
      %p123 = scmp.eq.s32.totalorder %s122, 0
      %s125 = sadd.s32 %s124, 1
      %s126 = scalar_select %p123, %s124, %s125
      %p129 = pneg %p123
      %p130 = scmp.eq.s32.totalorder %s13, 7
      %p131 = por %p129, %p130
      %p132 = scmp.ne.s32.totalorder %s124, %s127
      %p133 = scmp.eq.s32.totalorder %s13, 0
      %p134 = por %p132, %p133
      %p135 = scmp.ne.s32.totalorder %s124, %s127
      %p136 = scmp.eq.s32.totalorder %s18, 7
      %p137 = por %p135, %p136
      %p138 = scmp.ne.s32.totalorder %s127, %s128
      %p139 = scmp.eq.s32.totalorder %s18, 0
      %p140 = por %p138, %p139
      %p141 = scmp.ne.s32.totalorder %s127, %s128
      %p142 = scmp.eq.s32.totalorder %s19, 7
      %p143 = por %p141, %p142
      %p145 = scmp.ne.s32.totalorder %s128, %s144
      %p146 = scmp.eq.s32.totalorder %s19, 0
      %p147 = por %p145, %p146
      %s148 = ssub.s32 %s20, %s39
      %s149 = ssub.s32 %s21, %s35
      %s150 = sor.u32 %s148, %s149
      %p151 = scmp.eq.s32.totalorder %s150, 0
      %s153 = sadd.s32 %s152, 1
      %s154 = scalar_select %p151, %s152, %s153
      %p157 = pneg %p151
      %p158 = scmp.eq.s32.totalorder %s13, 7
      %p159 = por %p157, %p158
      %p160 = scmp.ne.s32.totalorder %s152, %s155
      %p161 = scmp.eq.s32.totalorder %s13, 0
      %p162 = por %p160, %p161
      %p163 = scmp.ne.s32.totalorder %s152, %s155
      %p164 = scmp.eq.s32.totalorder %s18, 7
      %p165 = por %p163, %p164
      %p166 = scmp.ne.s32.totalorder %s155, %s156
      %p167 = scmp.eq.s32.totalorder %s18, 0
      %p168 = por %p166, %p167
      %p169 = scmp.ne.s32.totalorder %s155, %s156
      %p170 = scmp.eq.s32.totalorder %s19, 7
      %p171 = por %p169, %p170
      %p173 = scmp.ne.s32.totalorder %s156, %s172
      %p174 = scmp.eq.s32.totalorder %s19, 0
      %p175 = por %p173, %p174
      %p176 = scmp.le.s32.totalorder 1, %s13
      %p177 = scmp.lt.s32.totalorder %s13, 9
      %p178 = pnand %p176, %p177
      %p179 = pneg %p178
      // Predicated region
      $region9: #{conv2d_bn_act.1} parent=5 // pred_check
        _
      $region10: #{conv2d_bn_act.1} parent=5 // pred_check_branch
        %181 = sbr.rel (%p178) target = $region12
      $region11: #{conv2d_bn_act.1} parent=5 // pred_region
        %s182 = ssub.s32 %s13, 1
        // Predicated region
        $region13: #{conv2d_bn_act.1} parent=11 // pred_check
          %p183 = pneg %p88
        $region14: #{conv2d_bn_act.1} parent=11 // pred_check_branch
          %185 = sbr.rel (%p183) target = $region16
        $region15: #{conv2d_bn_act.1} parent=11 // pred_region
          %s186 = smul.u32 7, %s25
          %p187 = scmp.lt.s32.totalorder %s186, 6
          %s188 = scalar_select %p187, %s186, 6
          %p189 = scmp.lt.s32.totalorder %s24, 0
          %s190 = scalar_select %p189, %s24, 0
          %s191 = sadd.s32 %s190, %s188
          %s192 = smul.addr %s191, 4
          %s193 = scalar_lea.vmem %s1, %s192
          %s194 = smul.u32 7, %s25
        $region16: #{conv2d_bn_act.1} parent=11 // pred_fallthru
          _
        // Predicated region
        $region17: #{conv2d_bn_act.1} parent=11 // pred_check
          %p195 = pneg %p114
        $region18: #{conv2d_bn_act.1} parent=11 // pred_check_branch
          %197 = sbr.rel (%p195) target = $region20
        $region19: #{conv2d_bn_act.1} parent=11 // pred_region
          %p198 = scmp.lt.s32.totalorder %s24, 0
          %s199 = scalar_select %p198, %s24, 0
          %s200 = scalar_lea.vmem %s2, %s199
        $region20: #{conv2d_bn_act.1} parent=11 // pred_fallthru
          _
        // Predicated region
        $region21: #{conv2d_bn_act.1} parent=11 // pred_check
          %p201 = pneg %p140
        $region22: #{conv2d_bn_act.1} parent=11 // pred_check_branch
          %203 = sbr.rel (%p201) target = $region24
        $region23: #{conv2d_bn_act.1} parent=11 // pred_region
          %p204 = scmp.lt.s32.totalorder %s24, 0
          %s205 = scalar_select %p204, %s24, 0
          %s206 = scalar_lea.vmem %s3, %s205
        $region24: #{conv2d_bn_act.1} parent=11 // pred_fallthru
          _
      $region12: #{conv2d_bn_act.1} parent=5 // pred_fallthru
        _
      %p207 = scmp.lt.s32.totalorder %s13, 8
      // Predicated region
      $region25: #{conv2d_bn_act.1} parent=5 // pred_check
        %p208 = pneg %p207
      $region26: #{conv2d_bn_act.1} parent=5 // pred_check_branch
        %210 = sbr.rel (%p208) target = $region28
      $region27: #{conv2d_bn_act.1} parent=5 // pred_region
        // Predicated region
        $region29: #{conv2d_bn_act.1} parent=27 // pred_check
          %p211 = pneg %p54
        $region30: #{conv2d_bn_act.1} parent=27 // pred_check_branch
          %213 = sbr.rel (%p211) target = $region32
        $region31: #{conv2d_bn_act.1} parent=27 // pred_region
          %s214 = smul.u32 32, %s20
          %p215 = scmp.lt.s32.totalorder %s214, 255
          %s216 = scalar_select %p215, %s214, 255
          %p217 = scmp.lt.s32.totalorder %s22, 0
          %s218 = scalar_select %p217, %s22, 0
          %s219 = sadd.s32 %s218, %s216
          %s220 = smul.addr %s219, 4
          %s221 = scalar_lea.vmem %s0, %s220
          %s222 = smul.u32 32, %s20
        $region32: #{conv2d_bn_act.1} parent=27 // pred_fallthru
          _
      $region28: #{conv2d_bn_act.1} parent=5 // pred_fallthru
        _
      %p223 = scmp.le.s32.totalorder 1, %s13
      %p224 = scmp.lt.s32.totalorder %s13, 9
      %p225 = pnand %p223, %p224
      %p226 = pneg %p225
      // Predicated region
      $region33: #{conv2d_bn_act.1} parent=5 // pred_check
        _
      $region34: #{conv2d_bn_act.1} parent=5 // pred_check_branch
        %228 = sbr.rel (%p225) target = $region36
      $region35: #{conv2d_bn_act.1} parent=5 // pred_region
        %s229 = ssub.s32 %s13, 1
        %s230 = smul.u32 32, %s23
        %p231 = scmp.lt.s32.totalorder %s230, 255
        %s232 = scalar_select %p231, %s230, 255
        %p233 = scmp.lt.s32.totalorder %s25, 0
        %s234 = scalar_select %p233, %s25, 0
        %s235 = sadd.s32 %s234, %s232
        %s236 = smul.addr %s235, 4
        %s237 = scalar_lea.vmem %s0, %s236
        %p238 = pneg %p60
        %p239 = pneg %p57
        %s240 = smul.u32 7, %s25
        %p241 = scmp.lt.s32.totalorder %s240, 6
        %s242 = scalar_select %p241, %s240, 6
        %p243 = scmp.lt.s32.totalorder %s24, 0
        %s244 = scalar_select %p243, %s24, 0
        %s245 = sadd.s32 %s244, %s242
        %s246 = smul.addr %s245, 4
        %s247 = scalar_lea.vmem %s1, %s246
        %p248 = pneg %p88
        %p249 = pneg %p85
        %p250 = scmp.lt.s32.totalorder %s24, 0
        %s251 = scalar_select %p250, %s24, 0
        %s252 = scalar_lea.vmem %s2, %s251
        %p253 = pneg %p114
        %p254 = pneg %p111
        %p255 = scmp.lt.s32.totalorder %s24, 0
        %s256 = scalar_select %p255, %s24, 0
        %s257 = scalar_lea.vmem %s3, %s256
        %p258 = pneg %p140
        %p259 = pneg %p137
        %p260 = pneg %p168
        %p261 = pneg %p165
        %s262 = sand.u32 %s155, 1
        %s263 = scalar_lea.sflag [#allocation4], %s262
        %s264 = sand.u32 %s155, 1
        %s265 = smul.addr %s264, 128
        %s266 = scalar_lea.vmem [#allocation3], %s265
        %s267 = smul.u32 32, %s23
        %p268 = scmp.lt.s32.totalorder %s267, 255
        %s269 = scalar_select %p268, %s267, 255
        %p270 = scmp.lt.s32.totalorder %s25, 0
        %s271 = scalar_select %p270, %s25, 0
        %s272 = sadd.s32 %s271, %s269
        %s273 = smul.addr %s272, 4
        %s274 = scalar_lea.vmem %s0, %s273
        %s275 = smul.u32 32, %s23
        %s276 = smul.u32 7, %s25
        %p277 = scmp.lt.s32.totalorder %s276, 6
        %s278 = scalar_select %p277, %s276, 6
        %p279 = scmp.lt.s32.totalorder %s24, 0
        %s280 = scalar_select %p279, %s24, 0
        %s281 = sadd.s32 %s280, %s278
        %s282 = smul.addr %s281, 4
        %s283 = scalar_lea.vmem %s1, %s282
        %s284 = smul.u32 7, %s25
        %p285 = scmp.lt.s32.totalorder %s24, 0
        %s286 = scalar_select %p285, %s24, 0
        %s287 = scalar_lea.vmem %s2, %s286
        %p288 = scmp.lt.s32.totalorder %s24, 0
        %s289 = scalar_select %p288, %s24, 0
        %s290 = scalar_lea.vmem %s3, %s289
        %s291 = smul.u32 32, %s23
        %p293 = scmp.eq.s32.totalorder %s25, 0
        // Predicated region
        $region37: #{conv2d_bn_act.1} parent=35 // pred_check
          %p294 = pneg %p293
        $region38: #{conv2d_bn_act.1} parent=35 // pred_check_branch
          %296 = sbr.rel (%p294) target = $region40
        $region39: #{conv2d_bn_act.1} parent=35 // pred_region
          %vm297 = vcmask 523264
          %298 = vst.msk [vmem:[#allocation2] sm:$0xff] %vm297, 0.0
          %299 = vst.msk [vmem:[#allocation2 + $0x8] sm:$0xff] %vm297, 0.0
          %300 = vst.msk [vmem:[#allocation2 + $0x10] sm:$0xff] %vm297, 0.0
          %301 = vst.msk [vmem:[#allocation2 + $0x18] sm:$0xff] %vm297, 0.0
          %302 = vst.msk [vmem:[#allocation2 + $0x20] sm:$0xff] %vm297, 0.0
          %303 = vst.msk [vmem:[#allocation2 + $0x28] sm:$0xff] %vm297, 0.0
          %304 = vst.msk [vmem:[#allocation2 + $0x30] sm:$0xff] %vm297, 0.0
          %305 = vst.msk [vmem:[#allocation2 + $0x38] sm:$0xff] %vm297, 0.0
          %306 = vst.msk [vmem:[#allocation2 + $0x40] sm:$0xff] %vm297, 0.0
          %307 = vst.msk [vmem:[#allocation2 + $0x48] sm:$0xff] %vm297, 0.0
          %308 = vst.msk [vmem:[#allocation2 + $0x50] sm:$0xff] %vm297, 0.0
          %309 = vst.msk [vmem:[#allocation2 + $0x58] sm:$0xff] %vm297, 0.0
          %310 = vst.msk [vmem:[#allocation2 + $0x60] sm:$0xff] %vm297, 0.0
          %311 = vst.msk [vmem:[#allocation2 + $0x68] sm:$0xff] %vm297, 0.0
          %312 = vst.msk [vmem:[#allocation2 + $0x70] sm:$0xff] %vm297, 0.0
          %313 = vst.msk [vmem:[#allocation2 + $0x78] sm:$0xff] %vm297, 0.0
          %314 = vst.msk [vmem:[#allocation2 + $0x80] sm:$0xff] %vm297, 0.0
          %315 = vst.msk [vmem:[#allocation2 + $0x88] sm:$0xff] %vm297, 0.0
          %316 = vst.msk [vmem:[#allocation2 + $0x90] sm:$0xff] %vm297, 0.0
          %317 = vst.msk [vmem:[#allocation2 + $0x98] sm:$0xff] %vm297, 0.0
          %318 = vst.msk [vmem:[#allocation2 + $0xa0] sm:$0xff] %vm297, 0.0
          %319 = vst.msk [vmem:[#allocation2 + $0xa8] sm:$0xff] %vm297, 0.0
          %320 = vst.msk [vmem:[#allocation2 + $0xb0] sm:$0xff] %vm297, 0.0
          %321 = vst.msk [vmem:[#allocation2 + $0xb8] sm:$0xff] %vm297, 0.0
          %322 = vst.msk [vmem:[#allocation2 + $0xc0] sm:$0xff] %vm297, 0.0
          %323 = vst.msk [vmem:[#allocation2 + $0xc8] sm:$0xff] %vm297, 0.0
          %324 = vst.msk [vmem:[#allocation2 + $0xd0] sm:$0xff] %vm297, 0.0
          %325 = vst.msk [vmem:[#allocation2 + $0xd8] sm:$0xff] %vm297, 0.0
          %326 = vst.msk [vmem:[#allocation2 + $0xe0] sm:$0xff] %vm297, 0.0
          %327 = vst.msk [vmem:[#allocation2 + $0xe8] sm:$0xff] %vm297, 0.0
          %328 = vst.msk [vmem:[#allocation2 + $0xf0] sm:$0xff] %vm297, 0.0
          %329 = vst.msk [vmem:[#allocation2 + $0xf8] sm:$0xff] %vm297, 0.0
        $region40: #{conv2d_bn_act.1} parent=35 // pred_fallthru
          _
        %v330 = vld [vmem:[#allocation2] sm:$0xff]
        %v331 = vld [vmem:[#allocation2 + $0x8] sm:$0xff]
        %v332 = vld [vmem:[#allocation2 + $0x10] sm:$0xff]
        %v333 = vld [vmem:[#allocation2 + $0x18] sm:$0xff]
        %v334 = vld [vmem:[#allocation2 + $0x20] sm:$0xff]
        %v335 = vld [vmem:[#allocation2 + $0x28] sm:$0xff]
        %v336 = vld [vmem:[#allocation2 + $0x30] sm:$0xff]
        %v337 = vld [vmem:[#allocation2 + $0x38] sm:$0xff]
        %v338 = vld [vmem:[#allocation2 + $0x40] sm:$0xff]
        %v339 = vld [vmem:[#allocation2 + $0x48] sm:$0xff]
        %v340 = vld [vmem:[#allocation2 + $0x50] sm:$0xff]
        %v341 = vld [vmem:[#allocation2 + $0x58] sm:$0xff]
        %v342 = vld [vmem:[#allocation2 + $0x60] sm:$0xff]
        %v343 = vld [vmem:[#allocation2 + $0x68] sm:$0xff]
        %v344 = vld [vmem:[#allocation2 + $0x70] sm:$0xff]
        %v345 = vld [vmem:[#allocation2 + $0x78] sm:$0xff]
        %v346 = vld [vmem:[#allocation2 + $0x80] sm:$0xff]
        %v347 = vld [vmem:[#allocation2 + $0x88] sm:$0xff]
        %v348 = vld [vmem:[#allocation2 + $0x90] sm:$0xff]
        %v349 = vld [vmem:[#allocation2 + $0x98] sm:$0xff]
        %v350 = vld [vmem:[#allocation2 + $0xa0] sm:$0xff]
        %v351 = vld [vmem:[#allocation2 + $0xa8] sm:$0xff]
        %v352 = vld [vmem:[#allocation2 + $0xb0] sm:$0xff]
        %v353 = vld [vmem:[#allocation2 + $0xb8] sm:$0xff]
        %v354 = vld [vmem:[#allocation2 + $0xc0] sm:$0xff]
        %v355 = vld [vmem:[#allocation2 + $0xc8] sm:$0xff]
        %v356 = vld [vmem:[#allocation2 + $0xd0] sm:$0xff]
        %v357 = vld [vmem:[#allocation2 + $0xd8] sm:$0xff]
        %v358 = vld [vmem:[#allocation2 + $0xe0] sm:$0xff]
        %v359 = vld [vmem:[#allocation2 + $0xe8] sm:$0xff]
        %v360 = vld [vmem:[#allocation2 + $0xf0] sm:$0xff]
        %v361 = vld [vmem:[#allocation2 + $0xf8] sm:$0xff]
        %v362 = vld [vmem:[%s274] sm:$0xf]
        %v363 = vld [vmem:[%s274 + $0x4] sm:$0xf]
        %v364 = vld [vmem:[%s274 + $0x8] sm:$0xf]
        %v365 = vld [vmem:[%s274 + $0xc] sm:$0xf]
        %v366 = vld [vmem:[%s274 + $0x10] sm:$0xf]
        %v367 = vld [vmem:[%s274 + $0x14] sm:$0xf]
        %v368 = vld [vmem:[%s274 + $0x18] sm:$0xf]
        %v369 = vld [vmem:[%s274 + $0x1c] sm:$0xf]
        %v370 = vld [vmem:[%s274 + $0x20] sm:$0xf]
        %v371 = vld [vmem:[%s274 + $0x24] sm:$0xf]
        %v372 = vld [vmem:[%s274 + $0x28] sm:$0xf]
        %v373 = vld [vmem:[%s274 + $0x2c] sm:$0xf]
        %v374 = vld [vmem:[%s274 + $0x30] sm:$0xf]
        %v375 = vld [vmem:[%s274 + $0x34] sm:$0xf]
        %v376 = vld [vmem:[%s274 + $0x38] sm:$0xf]
        %v377 = vld [vmem:[%s274 + $0x3c] sm:$0xf]
        %v378 = vld [vmem:[%s274 + $0x40] sm:$0xf]
        %v379 = vld [vmem:[%s274 + $0x44] sm:$0xf]
        %v380 = vld [vmem:[%s274 + $0x48] sm:$0xf]
        %v381 = vld [vmem:[%s274 + $0x4c] sm:$0xf]
        %v382 = vld [vmem:[%s274 + $0x50] sm:$0xf]
        %v383 = vld [vmem:[%s274 + $0x54] sm:$0xf]
        %v384 = vld [vmem:[%s274 + $0x58] sm:$0xf]
        %v385 = vld [vmem:[%s274 + $0x5c] sm:$0xf]
        %v386 = vld [vmem:[%s274 + $0x60] sm:$0xf]
        %v387 = vld [vmem:[%s274 + $0x64] sm:$0xf]
        %v388 = vld [vmem:[%s274 + $0x68] sm:$0xf]
        %v389 = vld [vmem:[%s274 + $0x6c] sm:$0xf]
        %v390 = vld [vmem:[%s274 + $0x70] sm:$0xf]
        %v391 = vld [vmem:[%s274 + $0x74] sm:$0xf]
        %v392 = vld [vmem:[%s274 + $0x78] sm:$0xf]
        %v393 = vld [vmem:[%s274 + $0x7c] sm:$0xf]
        %v394 = vld [vmem:[%s283] sm:$0xf]
        %v395 = vld [vmem:[%s283 + $0x4] sm:$0xf]
        %v396 = vld [vmem:[%s283 + $0x8] sm:$0xf]
        %v397 = vld [vmem:[%s283 + $0xc] sm:$0xf]
        %v398 = vld [vmem:[%s283 + $0x10] sm:$0xf]
        %v399 = vld [vmem:[%s283 + $0x14] sm:$0xf]
        %v400 = vld [vmem:[%s283 + $0x18] sm:$0x1]
        %v433 = vunpack.c.l.b16 %v362
        %v434 = vunpack.c.l.b16 %v363
        %v435 = vunpack.c.l.b16 %v364
        %v436 = vunpack.c.l.b16 %v365
        %v437 = vunpack.c.l.b16 %v366
        %v438 = vunpack.c.l.b16 %v367
        %v439 = vunpack.c.l.b16 %v368
        %v440 = vunpack.c.l.b16 %v369
        %v441 = vunpack.c.l.b16 %v370
        %v442 = vunpack.c.l.b16 %v371
        %v443 = vunpack.c.l.b16 %v372
        %v444 = vunpack.c.l.b16 %v373
        %v445 = vunpack.c.l.b16 %v374
        %v446 = vunpack.c.l.b16 %v375
        %v447 = vunpack.c.l.b16 %v376
        %v448 = vunpack.c.l.b16 %v377
        %v449 = vunpack.c.l.b16 %v378
        %v450 = vunpack.c.l.b16 %v379
        %v451 = vunpack.c.l.b16 %v380
        %v452 = vunpack.c.l.b16 %v381
        %v453 = vunpack.c.l.b16 %v382
        %v454 = vunpack.c.l.b16 %v383
        %v455 = vunpack.c.l.b16 %v384
        %v456 = vunpack.c.l.b16 %v385
        %v457 = vunpack.c.l.b16 %v386
        %v458 = vunpack.c.l.b16 %v387
        %v459 = vunpack.c.l.b16 %v388
        %v460 = vunpack.c.l.b16 %v389
        %v461 = vunpack.c.l.b16 %v390
        %v462 = vunpack.c.l.b16 %v391
        %v463 = vunpack.c.l.b16 %v392
        %v464 = vunpack.c.l.b16 %v393
        %v465 = vpack.c.b16 %v434, %v433
        %v466 = vpack.c.b16 %v436, %v435
        %v467 = vpack.c.b16 %v438, %v437
        %v468 = vpack.c.b16 %v440, %v439
        %v469 = vpack.c.b16 %v442, %v441
        %v470 = vpack.c.b16 %v444, %v443
        %v471 = vpack.c.b16 %v446, %v445
        %v472 = vpack.c.b16 %v448, %v447
        %v473 = vpack.c.b16 %v450, %v449
        %v474 = vpack.c.b16 %v452, %v451
        %v475 = vpack.c.b16 %v454, %v453
        %v476 = vpack.c.b16 %v456, %v455
        %v477 = vpack.c.b16 %v458, %v457
        %v478 = vpack.c.b16 %v460, %v459
        %v479 = vpack.c.b16 %v462, %v461
        %v480 = vpack.c.b16 %v464, %v463
        %v488 = vunpack.c.l.b16 %v394
        %v489 = vunpack.c.l.b16 %v395
        %v490 = vunpack.c.l.b16 %v396
        %v491 = vunpack.c.l.b16 %v397
        %v492 = vunpack.c.l.b16 %v398
        %v493 = vunpack.c.l.b16 %v399
        %v494 = vunpack.c.l.b16 %v400
        %v495 = vpack.c.b16 %v489, %v488
        %v496 = vpack.c.b16 %v491, %v490
        %v497 = vpack.c.b16 %v493, %v492
        %v498 = vpack.c.b16 %v494, %v494
        %vm502 = vcmask 400384
        %v504 = vsel %vm502, %v465, 0
        %v507 = vsel %vm502, %v466, 0
        %v510 = vsel %vm502, %v467, 0
        %v513 = vsel %vm502, %v468, 0
        %v516 = vsel %vm502, %v469, 0
        %v519 = vsel %vm502, %v470, 0
        %v522 = vsel %vm502, %v471, 0
        %v525 = vsel %vm502, %v472, 0
        %v528 = vsel %vm502, %v473, 0
        %v531 = vsel %vm502, %v474, 0
        %v534 = vsel %vm502, %v475, 0
        %v537 = vsel %vm502, %v476, 0
        %v540 = vsel %vm502, %v477, 0
        %v543 = vsel %vm502, %v478, 0
        %v546 = vsel %vm502, %v479, 0
        %v549 = vsel %vm502, %v480, 0
        %vm551 = vcmask 1040384
        %v552 = vsel 0, 4294967295, 65535
        %v553 = vsel %vm551, %v552, 0
        %v555 = vand.u32 %v498, %v553
        %557 = vmatprep.subr.bf16.mxu0 0
        %558 = vmatpush1.bf16.msra.mxu0 0
        %559 = vmatprep.subr.bf16.mxu0 0
        %560 = vmatpush1.bf16.msra.mxu0 0
        %561 = vmatprep.subr.bf16.mxu0 0
        %562 = vmatpush1.bf16.msra.mxu0 0
        %563 = vmatprep.subr.bf16.mxu0 0
        %564 = vmatpush1.bf16.msra.mxu0 0
        %565 = vmatprep.subr.bf16.mxu0 0
        %566 = vmatpush1.bf16.msra.mxu0 %v555
        %567 = vmatprep.subr.bf16.mxu0 0
        %568 = vmatpush1.bf16.msra.mxu0 %v497
        %569 = vmatprep.subr.bf16.mxu0 0
        %570 = vmatpush1.bf16.msra.mxu0 %v496
        %571 = vmatprep.subr.bf16.mxu0 0
        %572 = vmatpush1.bf16.msra.mxu0 %v495
        %573 = vmatprep.subr.bf16.mxu0 0
        %574 = vmatpush2.bf16.msra.mxu0 0
        %575 = vmatprep.subr.bf16.mxu0 0
        %576 = vmatpush2.bf16.msra.mxu0 0
        %577 = vmatprep.subr.bf16.mxu0 0
        %578 = vmatpush2.bf16.msra.mxu0 0
        %579 = vmatprep.subr.bf16.mxu0 0
        %580 = vmatpush2.bf16.msra.mxu0 0
        %581 = vmatprep.subr.bf16.mxu0 0
        %582 = vmatpush2.bf16.msra.mxu0 0
        %583 = vmatprep.subr.bf16.mxu0 0
        %584 = vmatpush2.bf16.msra.mxu0 0
        %585 = vmatprep.subr.bf16.mxu0 0
        %586 = vmatpush2.bf16.msra.mxu0 0
        %587 = vmatprep.subr.bf16.mxu0 0
        %588 = vmatpush2.bf16.msra.mxu0 0
        %589 = vmatprep.mubr.bf16.mxu0 0
        %590 = vmatmul.mubr.bf16.gmra.mxu0 %v504
        %v591 = vpop.f32.mrf.mxu0
        %v592 = vadd.f32 0.0, %v591
        %v593 = vpop.f32.mrf.mxu0
        %v594 = vpop.f32.mrf.mxu0
        %v595 = vadd.f32 0.0, %v594
        %v596 = vpop.f32.mrf.mxu0
        %597 = vmatprep.mubr.bf16.mxu0 0
        %598 = vmatmul.mubr.bf16.gmra.mxu0 %v507
        %v599 = vpop.f32.mrf.mxu0
        %v600 = vadd.f32 0.0, %v599
        %v601 = vpop.f32.mrf.mxu0
        %v602 = vpop.f32.mrf.mxu0
        %v603 = vadd.f32 0.0, %v602
        %v604 = vpop.f32.mrf.mxu0
        %605 = vmatprep.mubr.bf16.mxu0 0
        %606 = vmatmul.mubr.bf16.gmra.mxu0 %v510
        %v607 = vpop.f32.mrf.mxu0
        %v608 = vadd.f32 0.0, %v607
        %v609 = vpop.f32.mrf.mxu0
        %v610 = vpop.f32.mrf.mxu0
        %v611 = vadd.f32 0.0, %v610
        %v612 = vpop.f32.mrf.mxu0
        %613 = vmatprep.mubr.bf16.mxu0 0
        %614 = vmatmul.mubr.bf16.gmra.mxu0 %v513
        %v615 = vpop.f32.mrf.mxu0
        %v616 = vadd.f32 0.0, %v615
        %v617 = vpop.f32.mrf.mxu0
        %v618 = vpop.f32.mrf.mxu0
        %v619 = vadd.f32 0.0, %v618
        %v620 = vpop.f32.mrf.mxu0
        %621 = vmatprep.mubr.bf16.mxu0 0
        %622 = vmatmul.mubr.bf16.gmra.mxu0 %v516
        %v623 = vpop.f32.mrf.mxu0
        %v624 = vadd.f32 0.0, %v623
        %v625 = vpop.f32.mrf.mxu0
        %v626 = vpop.f32.mrf.mxu0
        %v627 = vadd.f32 0.0, %v626
        %v628 = vpop.f32.mrf.mxu0
        %629 = vmatprep.mubr.bf16.mxu0 0
        %630 = vmatmul.mubr.bf16.gmra.mxu0 %v519
        %v631 = vpop.f32.mrf.mxu0
        %v632 = vadd.f32 0.0, %v631
        %v633 = vpop.f32.mrf.mxu0
        %v634 = vpop.f32.mrf.mxu0
        %v635 = vadd.f32 0.0, %v634
        %v636 = vpop.f32.mrf.mxu0
        %637 = vmatprep.mubr.bf16.mxu0 0
        %638 = vmatmul.mubr.bf16.gmra.mxu0 %v522
        %v639 = vpop.f32.mrf.mxu0
        %v640 = vadd.f32 0.0, %v639
        %v641 = vpop.f32.mrf.mxu0
        %v642 = vpop.f32.mrf.mxu0
        %v643 = vadd.f32 0.0, %v642
        %v644 = vpop.f32.mrf.mxu0
        %645 = vmatprep.mubr.bf16.mxu0 0
        %646 = vmatmul.mubr.bf16.gmra.mxu0 %v525
        %v647 = vpop.f32.mrf.mxu0
        %v648 = vadd.f32 0.0, %v647
        %v649 = vpop.f32.mrf.mxu0
        %v650 = vpop.f32.mrf.mxu0
        %v651 = vadd.f32 0.0, %v650
        %v652 = vpop.f32.mrf.mxu0
        %653 = vmatprep.mubr.bf16.mxu0 0
        %654 = vmatmul.mubr.bf16.gmra.mxu0 %v528
        %v655 = vpop.f32.mrf.mxu0
        %v656 = vadd.f32 0.0, %v655
        %v657 = vpop.f32.mrf.mxu0
        %v658 = vpop.f32.mrf.mxu0
        %v659 = vadd.f32 0.0, %v658
        %v660 = vpop.f32.mrf.mxu0
        %661 = vmatprep.mubr.bf16.mxu0 0
        %662 = vmatmul.mubr.bf16.gmra.mxu0 %v531
        %v663 = vpop.f32.mrf.mxu0
        %v664 = vadd.f32 0.0, %v663
        %v665 = vpop.f32.mrf.mxu0
        %v666 = vpop.f32.mrf.mxu0
        %v667 = vadd.f32 0.0, %v666
        %v668 = vpop.f32.mrf.mxu0
        %669 = vmatprep.mubr.bf16.mxu0 0
        %670 = vmatmul.mubr.bf16.gmra.mxu0 %v534
        %v671 = vpop.f32.mrf.mxu0
        %v672 = vadd.f32 0.0, %v671
        %v673 = vpop.f32.mrf.mxu0
        %v674 = vpop.f32.mrf.mxu0
        %v675 = vadd.f32 0.0, %v674
        %v676 = vpop.f32.mrf.mxu0
        %677 = vmatprep.mubr.bf16.mxu0 0
        %678 = vmatmul.mubr.bf16.gmra.mxu0 %v537
        %v679 = vpop.f32.mrf.mxu0
        %v680 = vadd.f32 0.0, %v679
        %v681 = vpop.f32.mrf.mxu0
        %v682 = vpop.f32.mrf.mxu0
        %v683 = vadd.f32 0.0, %v682
        %v684 = vpop.f32.mrf.mxu0
        %685 = vmatprep.mubr.bf16.mxu0 0
        %686 = vmatmul.mubr.bf16.gmra.mxu0 %v540
        %v687 = vpop.f32.mrf.mxu0
        %v688 = vadd.f32 0.0, %v687
        %v689 = vpop.f32.mrf.mxu0
        %v690 = vpop.f32.mrf.mxu0
        %v691 = vadd.f32 0.0, %v690
        %v692 = vpop.f32.mrf.mxu0
        %693 = vmatprep.mubr.bf16.mxu0 0
        %694 = vmatmul.mubr.bf16.gmra.mxu0 %v543
        %v695 = vpop.f32.mrf.mxu0
        %v696 = vadd.f32 0.0, %v695
        %v697 = vpop.f32.mrf.mxu0
        %v698 = vpop.f32.mrf.mxu0
        %v699 = vadd.f32 0.0, %v698
        %v700 = vpop.f32.mrf.mxu0
        %701 = vmatprep.mubr.bf16.mxu0 0
        %702 = vmatmul.mubr.bf16.gmra.mxu0 %v546
        %v703 = vpop.f32.mrf.mxu0
        %v704 = vadd.f32 0.0, %v703
        %v705 = vpop.f32.mrf.mxu0
        %v706 = vpop.f32.mrf.mxu0
        %v707 = vadd.f32 0.0, %v706
        %v708 = vpop.f32.mrf.mxu0
        %709 = vmatprep.mubr.bf16.mxu0 0
        %710 = vmatmul.mubr.bf16.gmra.mxu0 %v549
        %v711 = vpop.f32.mrf.mxu0
        %v712 = vadd.f32 0.0, %v711
        %v713 = vpop.f32.mrf.mxu0
        %v714 = vpop.f32.mrf.mxu0
        %v715 = vadd.f32 0.0, %v714
        %v716 = vpop.f32.mrf.mxu0
        %717 = vdwg.mxu0
        %v718 = vadd.f32 %v330, %v592
        %v719 = vadd.f32 %v331, %v595
        %v720 = vadd.f32 %v332, %v600
        %v721 = vadd.f32 %v333, %v603
        %v722 = vadd.f32 %v334, %v608
        %v723 = vadd.f32 %v335, %v611
        %v724 = vadd.f32 %v336, %v616
        %v725 = vadd.f32 %v337, %v619
        %v726 = vadd.f32 %v338, %v624
        %v727 = vadd.f32 %v339, %v627
        %v728 = vadd.f32 %v340, %v632
        %v729 = vadd.f32 %v341, %v635
        %v730 = vadd.f32 %v342, %v640
        %v731 = vadd.f32 %v343, %v643
        %v732 = vadd.f32 %v344, %v648
        %v733 = vadd.f32 %v345, %v651
        %v734 = vadd.f32 %v346, %v656
        %v735 = vadd.f32 %v347, %v659
        %v736 = vadd.f32 %v348, %v664
        %v737 = vadd.f32 %v349, %v667
        %v738 = vadd.f32 %v350, %v672
        %v739 = vadd.f32 %v351, %v675
        %v740 = vadd.f32 %v352, %v680
        %v741 = vadd.f32 %v353, %v683
        %v742 = vadd.f32 %v354, %v688
        %v743 = vadd.f32 %v355, %v691
        %v744 = vadd.f32 %v356, %v696
        %v745 = vadd.f32 %v357, %v699
        %v746 = vadd.f32 %v358, %v704
        %v747 = vadd.f32 %v359, %v707
        %v748 = vadd.f32 %v360, %v712
        %v749 = vadd.f32 %v361, %v715
        %vm750 = vcmask 523264
        %751 = vst.msk [vmem:[#allocation2] sm:$0xff] %vm750, %v718
        %752 = vst.msk [vmem:[#allocation2 + $0x8] sm:$0xff] %vm750, %v719
        %753 = vst.msk [vmem:[#allocation2 + $0x10] sm:$0xff] %vm750, %v720
        %754 = vst.msk [vmem:[#allocation2 + $0x18] sm:$0xff] %vm750, %v721
        %755 = vst.msk [vmem:[#allocation2 + $0x20] sm:$0xff] %vm750, %v722
        %756 = vst.msk [vmem:[#allocation2 + $0x28] sm:$0xff] %vm750, %v723
        %757 = vst.msk [vmem:[#allocation2 + $0x30] sm:$0xff] %vm750, %v724
        %758 = vst.msk [vmem:[#allocation2 + $0x38] sm:$0xff] %vm750, %v725
        %759 = vst.msk [vmem:[#allocation2 + $0x40] sm:$0xff] %vm750, %v726
        %760 = vst.msk [vmem:[#allocation2 + $0x48] sm:$0xff] %vm750, %v727
        %761 = vst.msk [vmem:[#allocation2 + $0x50] sm:$0xff] %vm750, %v728
        %762 = vst.msk [vmem:[#allocation2 + $0x58] sm:$0xff] %vm750, %v729
        %763 = vst.msk [vmem:[#allocation2 + $0x60] sm:$0xff] %vm750, %v730
        %764 = vst.msk [vmem:[#allocation2 + $0x68] sm:$0xff] %vm750, %v731
        %765 = vst.msk [vmem:[#allocation2 + $0x70] sm:$0xff] %vm750, %v732
        %766 = vst.msk [vmem:[#allocation2 + $0x78] sm:$0xff] %vm750, %v733
        %767 = vst.msk [vmem:[#allocation2 + $0x80] sm:$0xff] %vm750, %v734
        %768 = vst.msk [vmem:[#allocation2 + $0x88] sm:$0xff] %vm750, %v735
        %769 = vst.msk [vmem:[#allocation2 + $0x90] sm:$0xff] %vm750, %v736
        %770 = vst.msk [vmem:[#allocation2 + $0x98] sm:$0xff] %vm750, %v737
        %771 = vst.msk [vmem:[#allocation2 + $0xa0] sm:$0xff] %vm750, %v738
        %772 = vst.msk [vmem:[#allocation2 + $0xa8] sm:$0xff] %vm750, %v739
        %773 = vst.msk [vmem:[#allocation2 + $0xb0] sm:$0xff] %vm750, %v740
        %774 = vst.msk [vmem:[#allocation2 + $0xb8] sm:$0xff] %vm750, %v741
        %775 = vst.msk [vmem:[#allocation2 + $0xc0] sm:$0xff] %vm750, %v742
        %776 = vst.msk [vmem:[#allocation2 + $0xc8] sm:$0xff] %vm750, %v743
        %777 = vst.msk [vmem:[#allocation2 + $0xd0] sm:$0xff] %vm750, %v744
        %778 = vst.msk [vmem:[#allocation2 + $0xd8] sm:$0xff] %vm750, %v745
        %779 = vst.msk [vmem:[#allocation2 + $0xe0] sm:$0xff] %vm750, %v746
        %780 = vst.msk [vmem:[#allocation2 + $0xe8] sm:$0xff] %vm750, %v747
        %781 = vst.msk [vmem:[#allocation2 + $0xf0] sm:$0xff] %vm750, %v748
        %782 = vst.msk [vmem:[#allocation2 + $0xf8] sm:$0xff] %vm750, %v749
        // Predicated region
        $region41: #{conv2d_bn_act.1} parent=35 // pred_check
          %p783 = pneg %p293
        $region42: #{conv2d_bn_act.1} parent=35 // pred_check_branch
          %785 = sbr.rel (%p783) target = $region44
        $region43: #{conv2d_bn_act.1} parent=35 // pred_region
          %v786 = vld [vmem:[#allocation2] sm:$0xff]
          %v787 = vld [vmem:[#allocation2 + $0x8] sm:$0xff]
          %v788 = vld [vmem:[#allocation2 + $0x10] sm:$0xff]
          %v789 = vld [vmem:[#allocation2 + $0x18] sm:$0xff]
          %v790 = vld [vmem:[#allocation2 + $0x20] sm:$0xff]
          %v791 = vld [vmem:[#allocation2 + $0x28] sm:$0xff]
          %v792 = vld [vmem:[#allocation2 + $0x30] sm:$0xff]
          %v793 = vld [vmem:[#allocation2 + $0x38] sm:$0xff]
          %v794 = vld [vmem:[#allocation2 + $0x40] sm:$0xff]
          %v795 = vld [vmem:[#allocation2 + $0x48] sm:$0xff]
          %v796 = vld [vmem:[#allocation2 + $0x50] sm:$0xff]
          %v797 = vld [vmem:[#allocation2 + $0x58] sm:$0xff]
          %v798 = vld [vmem:[#allocation2 + $0x60] sm:$0xff]
          %v799 = vld [vmem:[#allocation2 + $0x68] sm:$0xff]
          %v800 = vld [vmem:[#allocation2 + $0x70] sm:$0xff]
          %v801 = vld [vmem:[#allocation2 + $0x78] sm:$0xff]
          %v802 = vld [vmem:[#allocation2 + $0x80] sm:$0xff]
          %v803 = vld [vmem:[#allocation2 + $0x88] sm:$0xff]
          %v804 = vld [vmem:[#allocation2 + $0x90] sm:$0xff]
          %v805 = vld [vmem:[#allocation2 + $0x98] sm:$0xff]
          %v806 = vld [vmem:[#allocation2 + $0xa0] sm:$0xff]
          %v807 = vld [vmem:[#allocation2 + $0xa8] sm:$0xff]
          %v808 = vld [vmem:[#allocation2 + $0xb0] sm:$0xff]
          %v809 = vld [vmem:[#allocation2 + $0xb8] sm:$0xff]
          %v810 = vld [vmem:[#allocation2 + $0xc0] sm:$0xff]
          %v811 = vld [vmem:[#allocation2 + $0xc8] sm:$0xff]
          %v812 = vld [vmem:[#allocation2 + $0xd0] sm:$0xff]
          %v813 = vld [vmem:[#allocation2 + $0xd8] sm:$0xff]
          %v814 = vld [vmem:[#allocation2 + $0xe0] sm:$0xff]
          %v815 = vld [vmem:[#allocation2 + $0xe8] sm:$0xff]
          %v816 = vld [vmem:[#allocation2 + $0xf0] sm:$0xff]
          %v817 = vld [vmem:[#allocation2 + $0xf8] sm:$0xff]
          %v818 = vld [vmem:[%s287] sm:$0x1]
          %v820 = vlaneseq
          %v821 = vshrl.u32 %v820, 7
          %v822 = vsub.s32 0, %v821
          %v823 = vrot.slane %v818, %v822
          %v825 = vmul.f32 %v786, %v823
          %v826 = vmul.f32 %v787, %v823
          %v827 = vmul.f32 %v788, %v823
          %v828 = vmul.f32 %v789, %v823
          %v829 = vmul.f32 %v790, %v823
          %v830 = vmul.f32 %v791, %v823
          %v831 = vmul.f32 %v792, %v823
          %v832 = vmul.f32 %v793, %v823
          %v833 = vmul.f32 %v794, %v823
          %v834 = vmul.f32 %v795, %v823
          %v835 = vmul.f32 %v796, %v823
          %v836 = vmul.f32 %v797, %v823
          %v837 = vmul.f32 %v798, %v823
          %v838 = vmul.f32 %v799, %v823
          %v839 = vmul.f32 %v800, %v823
          %v840 = vmul.f32 %v801, %v823
          %v841 = vmul.f32 %v802, %v823
          %v842 = vmul.f32 %v803, %v823
          %v843 = vmul.f32 %v804, %v823
          %v844 = vmul.f32 %v805, %v823
          %v845 = vmul.f32 %v806, %v823
          %v846 = vmul.f32 %v807, %v823
          %v847 = vmul.f32 %v808, %v823
          %v848 = vmul.f32 %v809, %v823
          %v849 = vmul.f32 %v810, %v823
          %v850 = vmul.f32 %v811, %v823
          %v851 = vmul.f32 %v812, %v823
          %v852 = vmul.f32 %v813, %v823
          %v853 = vmul.f32 %v814, %v823
          %v854 = vmul.f32 %v815, %v823
          %v855 = vmul.f32 %v816, %v823
          %v856 = vmul.f32 %v817, %v823
          %v857 = vld [vmem:[%s290] sm:$0x1]
          %v859 = vlaneseq
          %v860 = vshrl.u32 %v859, 7
          %v861 = vsub.s32 0, %v860
          %v862 = vrot.slane %v857, %v861
          %v864 = vadd.f32 %v825, %v862
          %v865 = vadd.f32 %v826, %v862
          %v866 = vadd.f32 %v827, %v862
          %v867 = vadd.f32 %v828, %v862
          %v868 = vadd.f32 %v829, %v862
          %v869 = vadd.f32 %v830, %v862
          %v870 = vadd.f32 %v831, %v862
          %v871 = vadd.f32 %v832, %v862
          %v872 = vadd.f32 %v833, %v862
          %v873 = vadd.f32 %v834, %v862
          %v874 = vadd.f32 %v835, %v862
          %v875 = vadd.f32 %v836, %v862
          %v876 = vadd.f32 %v837, %v862
          %v877 = vadd.f32 %v838, %v862
          %v878 = vadd.f32 %v839, %v862
          %v879 = vadd.f32 %v840, %v862
          %v880 = vadd.f32 %v841, %v862
          %v881 = vadd.f32 %v842, %v862
          %v882 = vadd.f32 %v843, %v862
          %v883 = vadd.f32 %v844, %v862
          %v884 = vadd.f32 %v845, %v862
          %v885 = vadd.f32 %v846, %v862
          %v886 = vadd.f32 %v847, %v862
          %v887 = vadd.f32 %v848, %v862
          %v888 = vadd.f32 %v849, %v862
          %v889 = vadd.f32 %v850, %v862
          %v890 = vadd.f32 %v851, %v862
          %v891 = vadd.f32 %v852, %v862
          %v892 = vadd.f32 %v853, %v862
          %v893 = vadd.f32 %v854, %v862
          %v894 = vadd.f32 %v855, %v862
          %v895 = vadd.f32 %v856, %v862
          %v896 = vmax.f32 %v864, 0.0
          %v897 = vmax.f32 %v865, 0.0
          %v898 = vmax.f32 %v866, 0.0
          %v899 = vmax.f32 %v867, 0.0
          %v900 = vmax.f32 %v868, 0.0
          %v901 = vmax.f32 %v869, 0.0
          %v902 = vmax.f32 %v870, 0.0
          %v903 = vmax.f32 %v871, 0.0
          %v904 = vmax.f32 %v872, 0.0
          %v905 = vmax.f32 %v873, 0.0
          %v906 = vmax.f32 %v874, 0.0
          %v907 = vmax.f32 %v875, 0.0
          %v908 = vmax.f32 %v876, 0.0
          %v909 = vmax.f32 %v877, 0.0
          %v910 = vmax.f32 %v878, 0.0
          %v911 = vmax.f32 %v879, 0.0
          %v912 = vmax.f32 %v880, 0.0
          %v913 = vmax.f32 %v881, 0.0
          %v914 = vmax.f32 %v882, 0.0
          %v915 = vmax.f32 %v883, 0.0
          %v916 = vmax.f32 %v884, 0.0
          %v917 = vmax.f32 %v885, 0.0
          %v918 = vmax.f32 %v886, 0.0
          %v919 = vmax.f32 %v887, 0.0
          %v920 = vmax.f32 %v888, 0.0
          %v921 = vmax.f32 %v889, 0.0
          %v922 = vmax.f32 %v890, 0.0
          %v923 = vmax.f32 %v891, 0.0
          %v924 = vmax.f32 %v892, 0.0
          %v925 = vmax.f32 %v893, 0.0
          %v926 = vmax.f32 %v894, 0.0
          %v927 = vmax.f32 %v895, 0.0
          %v928 = vpack.c.bf16 %v897, %v896
          %v929 = vpack.c.bf16 %v899, %v898
          %v930 = vpack.c.bf16 %v901, %v900
          %v931 = vpack.c.bf16 %v903, %v902
          %v932 = vpack.c.bf16 %v905, %v904
          %v933 = vpack.c.bf16 %v907, %v906
          %v934 = vpack.c.bf16 %v909, %v908
          %v935 = vpack.c.bf16 %v911, %v910
          %v936 = vpack.c.bf16 %v913, %v912
          %v937 = vpack.c.bf16 %v915, %v914
          %v938 = vpack.c.bf16 %v917, %v916
          %v939 = vpack.c.bf16 %v919, %v918
          %v940 = vpack.c.bf16 %v921, %v920
          %v941 = vpack.c.bf16 %v923, %v922
          %v942 = vpack.c.bf16 %v925, %v924
          %v943 = vpack.c.bf16 %v927, %v926
          %v960 = vunpack.c.l.b16 %v928
          %v961 = vunpack.c.h.b16 %v928
          %v962 = vunpack.c.l.b16 %v929
          %v963 = vunpack.c.h.b16 %v929
          %v964 = vunpack.c.l.b16 %v930
          %v965 = vunpack.c.h.b16 %v930
          %v966 = vunpack.c.l.b16 %v931
          %v967 = vunpack.c.h.b16 %v931
          %v968 = vunpack.c.l.b16 %v932
          %v969 = vunpack.c.h.b16 %v932
          %v970 = vunpack.c.l.b16 %v933
          %v971 = vunpack.c.h.b16 %v933
          %v972 = vunpack.c.l.b16 %v934
          %v973 = vunpack.c.h.b16 %v934
          %v974 = vunpack.c.l.b16 %v935
          %v975 = vunpack.c.h.b16 %v935
          %v976 = vunpack.c.l.b16 %v936
          %v977 = vunpack.c.h.b16 %v936
          %v978 = vunpack.c.l.b16 %v937
          %v979 = vunpack.c.h.b16 %v937
          %v980 = vunpack.c.l.b16 %v938
          %v981 = vunpack.c.h.b16 %v938
          %v982 = vunpack.c.l.b16 %v939
          %v983 = vunpack.c.h.b16 %v939
          %v984 = vunpack.c.l.b16 %v940
          %v985 = vunpack.c.h.b16 %v940
          %v986 = vunpack.c.l.b16 %v941
          %v987 = vunpack.c.h.b16 %v941
          %v988 = vunpack.c.l.b16 %v942
          %v989 = vunpack.c.h.b16 %v942
          %v990 = vunpack.c.l.b16 %v943
          %v991 = vunpack.c.h.b16 %v943
          %v992 = vpack.c.b16 %v960, %v960
          %v993 = vpack.c.b16 %v961, %v961
          %v994 = vpack.c.b16 %v962, %v962
          %v995 = vpack.c.b16 %v963, %v963
          %v996 = vpack.c.b16 %v964, %v964
          %v997 = vpack.c.b16 %v965, %v965
          %v998 = vpack.c.b16 %v966, %v966
          %v999 = vpack.c.b16 %v967, %v967
          %v1000 = vpack.c.b16 %v968, %v968
          %v1001 = vpack.c.b16 %v969, %v969
          %v1002 = vpack.c.b16 %v970, %v970
          %v1003 = vpack.c.b16 %v971, %v971
          %v1004 = vpack.c.b16 %v972, %v972
          %v1005 = vpack.c.b16 %v973, %v973
          %v1006 = vpack.c.b16 %v974, %v974
          %v1007 = vpack.c.b16 %v975, %v975
          %v1008 = vpack.c.b16 %v976, %v976
          %v1009 = vpack.c.b16 %v977, %v977
          %v1010 = vpack.c.b16 %v978, %v978
          %v1011 = vpack.c.b16 %v979, %v979
          %v1012 = vpack.c.b16 %v980, %v980
          %v1013 = vpack.c.b16 %v981, %v981
          %v1014 = vpack.c.b16 %v982, %v982
          %v1015 = vpack.c.b16 %v983, %v983
          %v1016 = vpack.c.b16 %v984, %v984
          %v1017 = vpack.c.b16 %v985, %v985
          %v1018 = vpack.c.b16 %v986, %v986
          %v1019 = vpack.c.b16 %v987, %v987
          %v1020 = vpack.c.b16 %v988, %v988
          %v1021 = vpack.c.b16 %v989, %v989
          %v1022 = vpack.c.b16 %v990, %v990
          %v1023 = vpack.c.b16 %v991, %v991
          %vm1056 = vcmask 519168
          %1057 = vst.msk [vmem:[%s266] sm:$0xf] %vm1056, %v992
          %1058 = vst.msk [vmem:[%s266 + $0x4] sm:$0xf] %vm1056, %v993
          %1059 = vst.msk [vmem:[%s266 + $0x8] sm:$0xf] %vm1056, %v994
          %1060 = vst.msk [vmem:[%s266 + $0xc] sm:$0xf] %vm1056, %v995
          %1061 = vst.msk [vmem:[%s266 + $0x10] sm:$0xf] %vm1056, %v996
          %1062 = vst.msk [vmem:[%s266 + $0x14] sm:$0xf] %vm1056, %v997
          %1063 = vst.msk [vmem:[%s266 + $0x18] sm:$0xf] %vm1056, %v998
          %1064 = vst.msk [vmem:[%s266 + $0x1c] sm:$0xf] %vm1056, %v999
          %1065 = vst.msk [vmem:[%s266 + $0x20] sm:$0xf] %vm1056, %v1000
          %1066 = vst.msk [vmem:[%s266 + $0x24] sm:$0xf] %vm1056, %v1001
          %1067 = vst.msk [vmem:[%s266 + $0x28] sm:$0xf] %vm1056, %v1002
          %1068 = vst.msk [vmem:[%s266 + $0x2c] sm:$0xf] %vm1056, %v1003
          %1069 = vst.msk [vmem:[%s266 + $0x30] sm:$0xf] %vm1056, %v1004
          %1070 = vst.msk [vmem:[%s266 + $0x34] sm:$0xf] %vm1056, %v1005
          %1071 = vst.msk [vmem:[%s266 + $0x38] sm:$0xf] %vm1056, %v1006
          %1072 = vst.msk [vmem:[%s266 + $0x3c] sm:$0xf] %vm1056, %v1007
          %1073 = vst.msk [vmem:[%s266 + $0x40] sm:$0xf] %vm1056, %v1008
          %1074 = vst.msk [vmem:[%s266 + $0x44] sm:$0xf] %vm1056, %v1009
          %1075 = vst.msk [vmem:[%s266 + $0x48] sm:$0xf] %vm1056, %v1010
          %1076 = vst.msk [vmem:[%s266 + $0x4c] sm:$0xf] %vm1056, %v1011
          %1077 = vst.msk [vmem:[%s266 + $0x50] sm:$0xf] %vm1056, %v1012
          %1078 = vst.msk [vmem:[%s266 + $0x54] sm:$0xf] %vm1056, %v1013
          %1079 = vst.msk [vmem:[%s266 + $0x58] sm:$0xf] %vm1056, %v1014
          %1080 = vst.msk [vmem:[%s266 + $0x5c] sm:$0xf] %vm1056, %v1015
          %1081 = vst.msk [vmem:[%s266 + $0x60] sm:$0xf] %vm1056, %v1016
          %1082 = vst.msk [vmem:[%s266 + $0x64] sm:$0xf] %vm1056, %v1017
          %1083 = vst.msk [vmem:[%s266 + $0x68] sm:$0xf] %vm1056, %v1018
          %1084 = vst.msk [vmem:[%s266 + $0x6c] sm:$0xf] %vm1056, %v1019
          %1085 = vst.msk [vmem:[%s266 + $0x70] sm:$0xf] %vm1056, %v1020
          %1086 = vst.msk [vmem:[%s266 + $0x74] sm:$0xf] %vm1056, %v1021
          %1087 = vst.msk [vmem:[%s266 + $0x78] sm:$0xf] %vm1056, %v1022
          %1088 = vst.msk [vmem:[%s266 + $0x7c] sm:$0xf] %vm1056, %v1023
        $region44: #{conv2d_bn_act.1} parent=35 // pred_fallthru
          _
        %s1089 = sand.u32 %s155, 1
        %s1090 = scalar_lea.sflag [#allocation4], %s1089
        %s1091 = sand.u32 %s155, 1
        %s1092 = smul.addr %s1091, 128
        %s1093 = scalar_lea.vmem [#allocation3], %s1092
        // Predicated region
        $region45: #{conv2d_bn_act.1} parent=35 // pred_check
          %p1094 = pneg %p165
        $region46: #{conv2d_bn_act.1} parent=35 // pred_check_branch
          %1096 = sbr.rel (%p1094) target = $region48
        $region47: #{conv2d_bn_act.1} parent=35 // pred_region
          %s1097 = smul.u32 32, %s23
          %s1099 = ssub.s32 2048, 2048
          %1100 = vsyncadd %s1090, %s1099
          %s1101 = sadd.s32 %s24, %s1097
          %s1102 = smul.addr %s1101, 64
          %s1103 = scalar_lea.hbm %s4, %s1102
          %s1104 = sshll.u32 %s1093, 4
          %s1105 = int_to_ptr.vmem [resolvable:$true] %s1104
          %1110 = dma.vmem_to_hbm [thread:$0]  %s1105, 2048, %s1103, %s1090, 64, 64, 4
        $region48: #{conv2d_bn_act.1} parent=35 // pred_fallthru
          _
      $region36: #{conv2d_bn_act.1} parent=5 // pred_fallthru
        _
      %p1111 = scmp.le.s32.totalorder 2, %s13
      // Predicated region
      $region49: #{conv2d_bn_act.1} parent=5 // pred_check
        %p1112 = pneg %p1111
      $region50: #{conv2d_bn_act.1} parent=5 // pred_check_branch
        %1114 = sbr.rel (%p1112) target = $region52
      $region51: #{conv2d_bn_act.1} parent=5 // pred_region
        %s1115 = ssub.s32 %s13, 2
        // Predicated region
        $region53: #{conv2d_bn_act.1} parent=51 // pred_check
          %p1116 = pneg %p171
        $region54: #{conv2d_bn_act.1} parent=51 // pred_check_branch
          %1118 = sbr.rel (%p1116) target = $region56
        $region55: #{conv2d_bn_act.1} parent=51 // pred_region
          %s1119 = sand.u32 %s156, 1
          %s1120 = scalar_lea.sflag [#allocation4], %s1119
          %s1121 = sand.u32 %s156, 1
          %s1122 = smul.addr %s1121, 128
          %s1123 = scalar_lea.vmem [#allocation3], %s1122
          %1124 = dma.done %s1120, 2048
        $region56: #{conv2d_bn_act.1} parent=51 // pred_fallthru
          _
      $region52: #{conv2d_bn_act.1} parent=5 // pred_fallthru
        _
    $region6: #{conv2d_bn_act.1} parent=1 // loop_footer
      %s17 = sadd.s32 1, %s13
    $region7: #{conv2d_bn_act.1} parent=1 // loop_footer_branch
      %12 = sbr.rel target = $region3
    $region8: #{conv2d_bn_act.1} parent=1 // loop_exit
      _
    %1125 = vsyncpa [#allocation4], 1
    %s1126 = scalar_lea.sflag [#allocation4], 1
    %1127 = vsyncpa %s1126, 1

</llo_original>
